<compile_context>
chip_gen: v7x
topology: tpu7x:2x2x1
jax: 0.10.0
libtpu: 0.0.40
codegen_flags: <defaults>
</compile_context>

<pallas_src>
import functools

import jax
import jax.numpy as jnp
from jax import lax
from jax.experimental import pallas as pl
from jax.experimental.pallas import tpu as pltpu


def _cpm_kernel(x_ref, w_ref, b_ref, out_ref, pr_ref, *, train: bool):
    # x_ref  : (Bb, C, N)  activations in NCHW-flattened layout (N = H*W)
    # w_ref  : (K, C)      fc weight (PyTorch layout, no transpose needed)
    # b_ref  : (K, 1)      fc bias as a column
    # out_ref: (Bb, C, N)  x * (1 + norm)  (== h*norm + residual), same layout
    # pr_ref : (1, Bb, K)  L1-normalized per-class histogram; zeros in eval
    Bb, _, N = x_ref.shape
    K = w_ref.shape[0]

    w = w_ref[...]
    bias = b_ref[...].astype(jnp.float32)                          # (K, 1)
    # class-index iota, hoisted out of the per-batch loop
    row = lax.broadcasted_iota(jnp.int32, (K, N), 0)               # (K, N)

    if not train:
        pr_ref[...] = jnp.zeros(pr_ref.shape, pr_ref.dtype)

    for b in range(Bb):                                            # static unroll (Bb small)
        h = x_ref[b]                                               # (C, N)

        # logits s[k, n] = sum_c W[k, c] * h[c, n] + bias[k]       (MXU)
        s = lax.dot_general(w, h, (((1,), (0,)), ((), ())),
                            preferred_element_type=jnp.float32) + bias   # (K, N)

        # Analytic softmax shortcut:
        #   max(softmax(s)) = 1 / sum(exp(s - max(s)))
        #   argmax(softmax(s)) = argmax(s)   (first occurrence, as torch.max)
        m = jnp.max(s, axis=0, keepdims=True)                      # (1, N)
        sum_e = jnp.sum(jnp.exp(s - m), axis=0, keepdims=True)     # (1, N)
        max_val = 1.0 / sum_e                                      # (1, N)

        # F.normalize(max_val, p=2) over the token axis (per batch row), eps=1e-12
        l2 = jnp.sqrt(jnp.sum(max_val * max_val, axis=1, keepdims=True))   # (1, 1)
        norm = max_val / jnp.maximum(l2, 1e-12)                    # (1, N)

        # out = h*norm + residual  ==  h * (1 + norm); broadcast over channels.
        out_ref[b] = (h.astype(jnp.float32) * (norm + 1.0)).astype(out_ref.dtype)

        if train:
            # first-occurrence argmax over classes (on the logits), then
            # one-hot scatter of `norm` into the class histogram
            is_max = s == m                                        # (K, N)
            ids = jnp.min(jnp.where(is_max, row, K), axis=0, keepdims=True)  # (1, N)
            onehot = (row == ids).astype(jnp.float32)              # (K, N)
            # p_r[k] = sum_n onehot[k, n] * norm[n]  as (1,N) @ (K,N)^T on the MXU
            pr = lax.dot_general(norm, onehot, (((1,), (1,)), ((), ())),
                                 preferred_element_type=jnp.float32)         # (1, K)
            l1 = jnp.sum(jnp.abs(pr), axis=1, keepdims=True)       # (1, 1)
            pr_ref[0, b:b + 1, :] = (pr / jnp.maximum(l1, 1e-12)).astype(pr_ref.dtype)


def _pick_batch_block(batch: int, max_bb: int = 4) -> int:
    """Largest divisor of `batch` <= max_bb, preferring >= 2 grid steps (megacore)."""
    divisors = [d for d in range(1, min(batch, max_bb) + 1) if batch % d == 0]
    for d in reversed(divisors):
        if batch // d >= 2:
            return d
    return divisors[-1]


@functools.partial(jax.jit, static_argnames=("flag",))
def cpm_forward(x, weight, bias, flag="train"):
    """x: (B, C, H, W) NCHW; weight: (K, C) (PyTorch layout); bias: (K,)."""
    B, C, H, W = x.shape
    N = H * W
    K = weight.shape[0]

    x_bcn = x.reshape(B, C, N)            # free reshape -- no HBM transpose pass
    b_col = bias.reshape(K, 1)

    Bb = _pick_batch_block(B)
    G = B // Bb
    train = flag == "train"

    out_bcn, pr = pl.pallas_call(
        functools.partial(_cpm_kernel, train=train),
        out_shape=(
            jax.ShapeDtypeStruct((B, C, N), x.dtype),
            jax.ShapeDtypeStruct((G, Bb, K), jnp.float32),
        ),
        grid_spec=pltpu.PrefetchScalarGridSpec(
            num_scalar_prefetch=0,
            grid=(G,),
            in_specs=[
                pl.BlockSpec((Bb, C, N), lambda i: (i, 0, 0)),
                pl.BlockSpec((K, C), lambda i: (0, 0)),   # constant block -> fetched once
                pl.BlockSpec((K, 1), lambda i: (0, 0)),
            ],
            out_specs=[
                pl.BlockSpec((Bb, C, N), lambda i: (i, 0, 0)),
                pl.BlockSpec((1, Bb, K), lambda i: (i, 0, 0)),
            ],
        ),
        compiler_params=pltpu.CompilerParams(
            dimension_semantics=("parallel",),
            vmem_limit_bytes=32 * 1024 * 1024,
        ),
    )(x_bcn, weight, b_col)

    out = out_bcn.reshape(B, C, H, W)     # free reshape back to NCHW
    p_r = pr.reshape(B, K)
    return out, p_r


def _cpm_reference(x, weight, bias, flag="train"):
    """Pure-JAX reference mirroring the PyTorch forward (for validation)."""
    B, C, H, W = x.shape
    N = H * W
    K = weight.shape[0]
    h = jnp.transpose(x.reshape(B, C, N), (0, 2, 1))                  # (B,N,C)
    logits = jax.nn.softmax(h @ weight.T + bias, axis=-1)             # (B,N,K)
    max_val = jnp.max(logits, axis=-1)                                # (B,N)
    max_ids = jnp.argmax(logits, axis=-1)                             # (B,N)
    norm = max_val / jnp.maximum(
        jnp.sqrt(jnp.sum(max_val**2, axis=1, keepdims=True)), 1e-12)  # (B,N)
    if flag == "train":
        onehot = jax.nn.one_hot(max_ids, K, dtype=jnp.float32)        # (B,N,K)
        p_r = jnp.sum(onehot * norm[..., None], axis=1)               # (B,K)
        p_r = p_r / jnp.maximum(
            jnp.sum(jnp.abs(p_r), axis=1, keepdims=True), 1e-12)
    else:
        p_r = jnp.zeros((B, K), jnp.float32)
    xs = h * norm[..., None]
    out = jnp.transpose(xs, (0, 2, 1)).reshape(B, C, H, W) + x
    return out, p_r


if __name__ == "__main__":
    # Small shapes consistent with the module (C plays the role of 2208,
    # num_classes the role of 200, H*W the role of 7*7).
    B, C, H, W = 2, 32, 4, 4
    num_classes = 16

    key = jax.random.PRNGKey(0)
    kx, kw, kb = jax.random.split(key, 3)
    x = jax.random.normal(kx, (B, C, H, W), dtype=jnp.float32)

    # Deterministic nn.Linear-style init: U(-1/sqrt(C), 1/sqrt(C)).
    bound = 1.0 / jnp.sqrt(jnp.float32(C))
    weight = jax.random.uniform(kw, (num_classes, C), jnp.float32, -bound, bound)
    bias = jax.random.uniform(kb, (num_classes,), jnp.float32, -bound, bound)

    # train mode
    out, p_r = cpm_forward(x, weight, bias, flag="train")
    jax.block_until_ready((out, p_r))
    ref_out, ref_pr = _cpm_reference(x, weight, bias, flag="train")
    assert jnp.allclose(out, ref_out, atol=1e-4, rtol=1e-4), "train: out mismatch"
    assert jnp.allclose(p_r, ref_pr, atol=1e-4, rtol=1e-4), "train: p_r mismatch"

    # eval mode (separate, smaller kernel: p_r stage statically skipped)
    out_e, p_r_e = cpm_forward(x, weight, bias, flag="eval")
    jax.block_until_ready((out_e, p_r_e))
    ref_out_e, ref_pr_e = _cpm_reference(x, weight, bias, flag="eval")
    assert jnp.allclose(out_e, ref_out_e, atol=1e-4, rtol=1e-4), "eval: out mismatch"
    assert jnp.allclose(p_r_e, ref_pr_e, atol=1e-4, rtol=1e-4), "eval: p_r mismatch"

    print("KERNEL_OK")
</pallas_src>

<mosaic_0001>
module attributes {stable_mosaic.version = 11 : i64} {
  func.func @_cpm_kernel(%arg0: i32, %arg1: memref<1x32x16xf32, #tpu.memory_space<vmem>>, %arg2: memref<16x32xf32, #tpu.memory_space<vmem>>, %arg3: memref<16x1xf32, #tpu.memory_space<vmem>>, %arg4: memref<1x32x16xf32, #tpu.memory_space<vmem>>, %arg5: memref<1x1x16xf32, #tpu.memory_space<vmem>>) attributes {dimension_semantics = [#tpu.dimension_semantics<parallel>], iteration_bounds = array<i64: 2>, scalar_prefetch = 0 : i64, scratch_operands = 0 : i64, tpu.core_type = #tpu.core_type<tc>, window_params = [{transform_indices = @transform_0, window_bounds = array<i64: 1, 32, 16>}, {pipeline_mode = #tpu.pipeline_mode<synchronous>, transform_indices = @transform_1, window_bounds = array<i64: 16, 32>}, {pipeline_mode = #tpu.pipeline_mode<synchronous>, transform_indices = @transform_2, window_bounds = array<i64: 16, 1>}, {transform_indices = @transform_3, window_bounds = array<i64: 1, 32, 16>}, {transform_indices = @transform_4, window_bounds = array<i64: 1, 1, 16>}]} {
    %c0 = arith.constant 0 : index
    %c0_0 = arith.constant 0 : index
    %0 = vector.load %arg2[%c0, %c0_0] : memref<16x32xf32, #tpu.memory_space<vmem>>, vector<16x32xf32>
    %c0_1 = arith.constant 0 : index
    %c0_2 = arith.constant 0 : index
    %1 = vector.load %arg3[%c0_1, %c0_2] : memref<16x1xf32, #tpu.memory_space<vmem>>, vector<16x1xf32>
    %2 = tpu.iota {dimensions = array<i32: 0>} : vector<16x16xi32>
    %c0_3 = arith.constant 0 : index
    %c0_4 = arith.constant 0 : index
    %c0_5 = arith.constant 0 : index
    %3 = vector.load %arg1[%c0_3, %c0_4, %c0_5] : memref<1x32x16xf32, #tpu.memory_space<vmem>>, vector<1x32x16xf32>
    %4 = vector.shape_cast %3 : vector<1x32x16xf32> to vector<32x16xf32>
    %cst = arith.constant dense<0.000000e+00> : vector<16x16xf32>
    %5 = tpu.matmul %0, %4, %cst {dimension_numbers = #tpu.dot_dimension_numbers<[1], [0], [0], [1], [0, 0, 1, 1], [], []>} : vector<16x32xf32>, vector<32x16xf32>, vector<16x16xf32> -> vector<16x16xf32>
    %6 = vector.broadcast %1 : vector<16x1xf32> to vector<16x16xf32>
    %7 = arith.addf %5, %6 : vector<16x16xf32>
    %cst_6 = arith.constant dense<0xFF800000> : vector<16xf32>
    %8 = vector.multi_reduction <maximumf>, %7, %cst_6 [0] : vector<16x16xf32> to vector<16xf32>
    %9 = vector.shape_cast %8 : vector<16xf32> to vector<1x16xf32>
    %10 = vector.broadcast %9 : vector<1x16xf32> to vector<16x16xf32>
    %11 = arith.subf %7, %10 : vector<16x16xf32>
    %12 = math.exp %11 : vector<16x16xf32>
    %cst_7 = arith.constant dense<0.000000e+00> : vector<16xf32>
    %13 = vector.multi_reduction <add>, %12, %cst_7 [0] : vector<16x16xf32> to vector<16xf32>
    %14 = vector.shape_cast %13 : vector<16xf32> to vector<1x16xf32>
    %cst_8 = arith.constant 1.000000e+00 : f32
    %15 = vector.broadcast %cst_8 : f32 to vector<1x16xf32>
    %16 = arith.divf %15, %14 : vector<1x16xf32>
    %17 = arith.mulf %16, %16 : vector<1x16xf32>
    %cst_9 = arith.constant dense<0.000000e+00> : vector<1xf32>
    %18 = vector.multi_reduction <add>, %17, %cst_9 [1] : vector<1x16xf32> to vector<1xf32>
    %19 = vector.shape_cast %18 : vector<1xf32> to vector<1x1xf32>
    %20 = math.sqrt %19 : vector<1x1xf32>
    %cst_10 = arith.constant 9.99999996E-13 : f32
    %21 = vector.broadcast %cst_10 : f32 to vector<1x1xf32>
    %22 = arith.maximumf %20, %21 : vector<1x1xf32>
    %23 = vector.broadcast %22 : vector<1x1xf32> to vector<1x16xf32>
    %24 = arith.divf %16, %23 : vector<1x16xf32>
    %cst_11 = arith.constant 1.000000e+00 : f32
    %25 = vector.broadcast %cst_11 : f32 to vector<1x16xf32>
    %26 = arith.addf %24, %25 : vector<1x16xf32>
    %27 = vector.broadcast %26 : vector<1x16xf32> to vector<32x16xf32>
    %28 = arith.mulf %4, %27 : vector<32x16xf32>
    %c0_12 = arith.constant 0 : index
    %c0_13 = arith.constant 0 : index
    %c0_14 = arith.constant 0 : index
    %29 = vector.load %arg4[%c0_12, %c0_13, %c0_14] : memref<1x32x16xf32, #tpu.memory_space<vmem>>, vector<1x32x16xf32>
    %30 = vector.shape_cast %29 : vector<1x32x16xf32> to vector<32x16xf32>
    %31 = vector.shape_cast %28 : vector<32x16xf32> to vector<1x32x16xf32>
    tpu.vector_store %arg4[%c0_12, %c0_13, %c0_14], %31 {strides = array<i32>} : memref<1x32x16xf32, #tpu.memory_space<vmem>>, vector<1x32x16xf32>,
    %32 = vector.broadcast %9 : vector<1x16xf32> to vector<16x16xf32>
    %33 = arith.cmpf oeq, %7, %32 : vector<16x16xf32>
    %c16_i32 = arith.constant 16 : i32
    %34 = vector.broadcast %c16_i32 : i32 to vector<16x16xi32>
    %35 = arith.select %33, %2, %34 : vector<16x16xi1>, vector<16x16xi32>
    %cst_15 = arith.constant dense<2147483647> : vector<16xi32>
    %36 = vector.multi_reduction <minsi>, %35, %cst_15 [0] : vector<16x16xi32> to vector<16xi32>
    %37 = vector.shape_cast %36 : vector<16xi32> to vector<1x16xi32>
    %38 = vector.broadcast %37 : vector<1x16xi32> to vector<16x16xi32>
    %39 = arith.cmpi eq, %2, %38 : vector<16x16xi32>
    %40 = arith.extui %39 : vector<16x16xi1> to vector<16x16xi32>
    %41 = arith.sitofp %40 : vector<16x16xi32> to vector<16x16xf32>
    %cst_16 = arith.constant dense<0.000000e+00> : vector<1x16xf32>
    %42 = tpu.matmul %24, %41, %cst_16 {dimension_numbers = #tpu.dot_dimension_numbers<[1], [1], [0], [0], [0, 0, 1, 0], [], []>} : vector<1x16xf32>, vector<16x16xf32>, vector<1x16xf32> -> vector<1x16xf32>
    %43 = math.absf %42 : vector<1x16xf32>
    %cst_17 = arith.constant dense<0.000000e+00> : vector<1xf32>
    %44 = vector.multi_reduction <add>, %43, %cst_17 [1] : vector<1x16xf32> to vector<1xf32>
    %45 = vector.shape_cast %44 : vector<1xf32> to vector<1x1xf32>
    %cst_18 = arith.constant 9.99999996E-13 : f32
    %46 = vector.broadcast %cst_18 : f32 to vector<1x1xf32>
    %47 = arith.maximumf %45, %46 : vector<1x1xf32>
    %48 = vector.broadcast %47 : vector<1x1xf32> to vector<1x16xf32>
    %49 = arith.divf %42, %48 : vector<1x16xf32>
    %c0_19 = arith.constant 0 : index
    %c0_20 = arith.constant 0 : index
    %c0_21 = arith.constant 0 : index
    %50 = vector.load %arg5[%c0_19, %c0_20, %c0_21] : memref<1x1x16xf32, #tpu.memory_space<vmem>>, vector<1x1x16xf32>
    %51 = vector.shape_cast %50 : vector<1x1x16xf32> to vector<1x16xf32>
    %52 = vector.shape_cast %49 : vector<1x16xf32> to vector<1x1x16xf32>
    tpu.vector_store %arg5[%c0_19, %c0_20, %c0_21], %52 {strides = array<i32>} : memref<1x1x16xf32, #tpu.memory_space<vmem>>, vector<1x1x16xf32>,
    return
  }
  func.func @transform_0(%arg0: i32) -> (i32, i32, i32) {
    %c0_i32 = arith.constant 0 : i32
    %c0_i32_0 = arith.constant 0 : i32
    %c0_i32_1 = arith.constant 0 : i32
    return %arg0, %c0_i32, %c0_i32_0 : i32, i32, i32
  }
  func.func @transform_1(%arg0: i32) -> (i32, i32) {
    %c0_i32 = arith.constant 0 : i32
    %c0_i32_0 = arith.constant 0 : i32
    %c0_i32_1 = arith.constant 0 : i32
    return %c0_i32, %c0_i32_0 : i32, i32
  }
  func.func @transform_2(%arg0: i32) -> (i32, i32) {
    %c0_i32 = arith.constant 0 : i32
    %c0_i32_0 = arith.constant 0 : i32
    %c0_i32_1 = arith.constant 0 : i32
    return %c0_i32, %c0_i32_0 : i32, i32
  }
  func.func @transform_3(%arg0: i32) -> (i32, i32, i32) {
    %c0_i32 = arith.constant 0 : i32
    %c0_i32_0 = arith.constant 0 : i32
    %c0_i32_1 = arith.constant 0 : i32
    return %arg0, %c0_i32, %c0_i32_0 : i32, i32, i32
  }
  func.func @transform_4(%arg0: i32) -> (i32, i32, i32) {
    %c0_i32 = arith.constant 0 : i32
    %c0_i32_0 = arith.constant 0 : i32
    %c0_i32_1 = arith.constant 0 : i32
    return %arg0, %c0_i32, %c0_i32_0 : i32, i32, i32
  }
}

</mosaic_0001>

<llo_original>
// kernel: cpm_forward.1
$region0: #{cpm_forward.1}
  #allocation0 [shape = 'u32[]', space=smem, size = 0x4, offset = 0x4, fixed_abs, tag = 'smem constant byte address 0x4 - core index']
  #allocation1 [shape = 'u32[144,128]{1,0:T(1,128)}', space=vmem, size = 0x12000, scoped, tag = 'internal scratch']
  %s0 = inlined_call_operand.vmem [shape: f32[2,32,16], index: 0, kind: input, shape index: {}]
  %s1 = inlined_call_operand.vmem [shape: f32[16,32], index: 1, kind: input, shape index: {}]
  %s2 = inlined_call_operand.vmem [shape: f32[16,1], index: 2, kind: input, shape index: {}]
  %s3 = inlined_call_operand.vmem [shape: f32[2,32,16], index: 3, kind: output, shape index: {0}]
  %s4 = inlined_call_operand.hbm [shape: f32[2,1,16], index: 4, kind: output, shape index: {1}]
  %5 = xla_tuple %s3, %s4
  %s6 = sld [smem:[#allocation0]]
  $region53: #{cpm_forward.1} parent=0
    _
  %s8 = ssub.s32 1, %s6
  %s9 = scalar_select 0, %s8, %s6
  $region1: #{cpm_forward.1} parent=0
    #allocation2 [shape = 'u8[1024]{0}', space=vmem, size = 0x400, scoped, tag = 'output window, operand 1']
    #allocation3 [shape = 's32[2]{0}', space=sflag, size = 0x8, scoped, tag = 'scoped memory for cpm_forward.1']
    %10 = vsyncpa [#allocation3], 0
    %s11 = scalar_lea.sflag [#allocation3], 1
    %12 = vsyncpa %s11, 0
    loop: start=0, step=1, limit=4
    $region2: #{cpm_forward.1} parent=1 // loop_pre_header
      _
    $region3: #{cpm_forward.1} parent=1 // loop_header
      %s14 = sphi 0, %s18
      %p15 = scmp.ge.s32.totalorder %s14, 4
      %s24 = sphi 0, %s26
      %s27 = sphi 0, %s24
      %s28 = sphi 0, %s27
      %s44 = sphi 0, %s28
      %s48 = sphi 0, %s48
      %s50 = sphi 0, %s48
      %s51 = sphi 0, %s50
      %s65 = sphi 0, %s51
      %s69 = sphi 0, %s69
      %s71 = sphi 0, %s69
      %s72 = sphi 0, %s71
      %s86 = sphi 0, %s72
      %s92 = sphi 0, %s94
      %s95 = sphi 0, %s92
      %s96 = sphi 0, %s95
      %s112 = sphi 0, %s96
      %s118 = sphi 0, %s120
      %s121 = sphi 0, %s118
      %s122 = sphi 0, %s121
      %s138 = sphi 0, %s122
    $region4: #{cpm_forward.1} parent=1 // loop_header_branch
      %17 = sbr.rel (%p15) target = $region8
    $region5: #{cpm_forward.1} parent=1 // loop_body
      %s19 = ssub.s32 %s14, 1
      %s20 = ssub.s32 %s14, 2
      %s21 = sadd.s32 %s14, 1
      %s22 = ssub.s32 %s14, %s21
      %p23 = scmp.eq.s32.totalorder %s22, 0
      %s25 = sadd.s32 %s24, 1
      %s26 = scalar_select %p23, %s24, %s25
      %p29 = pneg %p23
      %p30 = scmp.eq.s32.totalorder %s14, 1
      %p31 = por %p29, %p30
      %p32 = scmp.ne.s32.totalorder %s24, %s27
      %p33 = scmp.eq.s32.totalorder %s14, 0
      %p34 = por %p32, %p33
      %p35 = scmp.ne.s32.totalorder %s24, %s27
      %p36 = scmp.eq.s32.totalorder %s19, 1
      %p37 = por %p35, %p36
      %p38 = scmp.ne.s32.totalorder %s27, %s28
      %p39 = scmp.eq.s32.totalorder %s19, 0
      %p40 = por %p38, %p39
      %p41 = scmp.ne.s32.totalorder %s27, %s28
      %p42 = scmp.eq.s32.totalorder %s20, 1
      %p43 = por %p41, %p42
      %p45 = scmp.ne.s32.totalorder %s28, %s44
      %p46 = scmp.eq.s32.totalorder %s20, 0
      %p47 = por %p45, %p46
      %s49 = sadd.s32 %s48, 1
      %p52 = scmp.eq.s32.totalorder %s14, 1
      %p53 = scmp.ne.s32.totalorder %s48, %s50
      %p54 = scmp.eq.s32.totalorder %s14, 0
      %p55 = por %p53, %p54
      %p56 = scmp.ne.s32.totalorder %s48, %s50
      %p57 = scmp.eq.s32.totalorder %s19, 1
      %p58 = por %p56, %p57
      %p59 = scmp.ne.s32.totalorder %s50, %s51
      %p60 = scmp.eq.s32.totalorder %s19, 0
      %p61 = por %p59, %p60
      %p62 = scmp.ne.s32.totalorder %s50, %s51
      %p63 = scmp.eq.s32.totalorder %s20, 1
      %p64 = por %p62, %p63
      %p66 = scmp.ne.s32.totalorder %s51, %s65
      %p67 = scmp.eq.s32.totalorder %s20, 0
      %p68 = por %p66, %p67
      %s70 = sadd.s32 %s69, 1
      %p73 = scmp.eq.s32.totalorder %s14, 1
      %p74 = scmp.ne.s32.totalorder %s69, %s71
      %p75 = scmp.eq.s32.totalorder %s14, 0
      %p76 = por %p74, %p75
      %p77 = scmp.ne.s32.totalorder %s69, %s71
      %p78 = scmp.eq.s32.totalorder %s19, 1
      %p79 = por %p77, %p78
      %p80 = scmp.ne.s32.totalorder %s71, %s72
      %p81 = scmp.eq.s32.totalorder %s19, 0
      %p82 = por %p80, %p81
      %p83 = scmp.ne.s32.totalorder %s71, %s72
      %p84 = scmp.eq.s32.totalorder %s20, 1
      %p85 = por %p83, %p84
      %p87 = scmp.ne.s32.totalorder %s72, %s86
      %p88 = scmp.eq.s32.totalorder %s20, 0
      %p89 = por %p87, %p88
      %s90 = ssub.s32 %s14, %s21
      %p91 = scmp.eq.s32.totalorder %s90, 0
      %s93 = sadd.s32 %s92, 1
      %s94 = scalar_select %p91, %s92, %s93
      %p97 = pneg %p91
      %p98 = scmp.eq.s32.totalorder %s14, 1
      %p99 = por %p97, %p98
      %p100 = scmp.ne.s32.totalorder %s92, %s95
      %p101 = scmp.eq.s32.totalorder %s14, 0
      %p102 = por %p100, %p101
      %p103 = scmp.ne.s32.totalorder %s92, %s95
      %p104 = scmp.eq.s32.totalorder %s19, 1
      %p105 = por %p103, %p104
      %p106 = scmp.ne.s32.totalorder %s95, %s96
      %p107 = scmp.eq.s32.totalorder %s19, 0
      %p108 = por %p106, %p107
      %p109 = scmp.ne.s32.totalorder %s95, %s96
      %p110 = scmp.eq.s32.totalorder %s20, 1
      %p111 = por %p109, %p110
      %p113 = scmp.ne.s32.totalorder %s96, %s112
      %p114 = scmp.eq.s32.totalorder %s20, 0
      %p115 = por %p113, %p114
      %s116 = ssub.s32 %s14, %s21
      %p117 = scmp.eq.s32.totalorder %s116, 0
      %s119 = sadd.s32 %s118, 1
      %s120 = scalar_select %p117, %s118, %s119
      %p123 = pneg %p117
      %p124 = scmp.eq.s32.totalorder %s14, 1
      %p125 = por %p123, %p124
      %p126 = scmp.ne.s32.totalorder %s118, %s121
      %p127 = scmp.eq.s32.totalorder %s14, 0
      %p128 = por %p126, %p127
      %p129 = scmp.ne.s32.totalorder %s118, %s121
      %p130 = scmp.eq.s32.totalorder %s19, 1
      %p131 = por %p129, %p130
      %p132 = scmp.ne.s32.totalorder %s121, %s122
      %p133 = scmp.eq.s32.totalorder %s19, 0
      %p134 = por %p132, %p133
      %p135 = scmp.ne.s32.totalorder %s121, %s122
      %p136 = scmp.eq.s32.totalorder %s20, 1
      %p137 = por %p135, %p136
      %p139 = scmp.ne.s32.totalorder %s122, %s138
      %p140 = scmp.eq.s32.totalorder %s20, 0
      %p141 = por %p139, %p140
      %p142 = scmp.le.s32.totalorder 1, %s14
      %p143 = scmp.lt.s32.totalorder %s14, 3
      %p144 = pnand %p142, %p143
      %p145 = pneg %p144
      // Predicated region
      $region9: #{cpm_forward.1} parent=5 // pred_check
        _
      $region10: #{cpm_forward.1} parent=5 // pred_check_branch
        %147 = sbr.rel (%p144) target = $region12
      $region11: #{cpm_forward.1} parent=5 // pred_region
        %s148 = ssub.s32 %s14, 1
        // Predicated region
        $region13: #{cpm_forward.1} parent=11 // pred_check
          %p149 = pneg %p61
        $region14: #{cpm_forward.1} parent=11 // pred_check_branch
          %151 = sbr.rel (%p149) target = $region16
        $region15: #{cpm_forward.1} parent=11 // pred_region
          _
        $region16: #{cpm_forward.1} parent=11 // pred_fallthru
          _
        // Predicated region
        $region17: #{cpm_forward.1} parent=11 // pred_check
          %p152 = pneg %p82
        $region18: #{cpm_forward.1} parent=11 // pred_check_branch
          %154 = sbr.rel (%p152) target = $region20
        $region19: #{cpm_forward.1} parent=11 // pred_region
          _
        $region20: #{cpm_forward.1} parent=11 // pred_fallthru
          _
      $region12: #{cpm_forward.1} parent=5 // pred_fallthru
        _
      %p155 = scmp.lt.s32.totalorder %s14, 2
      // Predicated region
      $region21: #{cpm_forward.1} parent=5 // pred_check
        %p156 = pneg %p155
      $region22: #{cpm_forward.1} parent=5 // pred_check_branch
        %158 = sbr.rel (%p156) target = $region24
      $region23: #{cpm_forward.1} parent=5 // pred_region
        // Predicated region
        $region25: #{cpm_forward.1} parent=23 // pred_check
          %p159 = pneg %p34
        $region26: #{cpm_forward.1} parent=23 // pred_check_branch
          %161 = sbr.rel (%p159) target = $region28
        $region27: #{cpm_forward.1} parent=23 // pred_region
          %p162 = scmp.lt.s32.totalorder %s14, 1
          %s163 = scalar_select %p162, %s14, 1
          %s164 = smul.addr %s163, 4
          %s165 = smul.addr %s164, 8
          %s166 = scalar_lea.vmem %s0, %s165
        $region28: #{cpm_forward.1} parent=23 // pred_fallthru
          _
      $region24: #{cpm_forward.1} parent=5 // pred_fallthru
        _
      %p167 = scmp.le.s32.totalorder 1, %s14
      %p168 = scmp.lt.s32.totalorder %s14, 3
      %p169 = pnand %p167, %p168
      %p170 = pneg %p169
      // Predicated region
      $region29: #{cpm_forward.1} parent=5 // pred_check
        _
      $region30: #{cpm_forward.1} parent=5 // pred_check_branch
        %172 = sbr.rel (%p169) target = $region32
      $region31: #{cpm_forward.1} parent=5 // pred_region
        %s173 = ssub.s32 %s14, 1
        %p174 = scmp.lt.s32.totalorder %s19, 1
        %s175 = scalar_select %p174, %s19, 1
        %s176 = smul.addr %s175, 4
        %s177 = smul.addr %s176, 8
        %s178 = scalar_lea.vmem %s0, %s177
        %p179 = pneg %p40
        %p180 = pneg %p37
        %p181 = pneg %p61
        %p182 = pneg %p58
        %p183 = pneg %p82
        %p184 = pneg %p79
        %p185 = pneg %p108
        %p186 = pneg %p105
        %p187 = scmp.lt.s32.totalorder %s19, 1
        %s188 = scalar_select %p187, %s19, 1
        %s189 = smul.addr %s188, 4
        %s190 = smul.addr %s189, 8
        %s191 = scalar_lea.vmem %s3, %s190
        %p192 = pneg %p134
        %p193 = pneg %p131
        %s194 = sand.u32 %s121, 1
        %s195 = scalar_lea.sflag [#allocation3], %s194
        %s196 = sand.u32 %s121, 1
        %s197 = scalar_lea.vmem [#allocation2], %s196
        %p198 = scmp.lt.s32.totalorder %s19, 1
        %s199 = scalar_select %p198, %s19, 1
        %s200 = smul.addr %s199, 4
        %s201 = smul.addr %s200, 8
        %s202 = scalar_lea.vmem %s0, %s201
        %p203 = scmp.lt.s32.totalorder %s19, 1
        %s204 = scalar_select %p203, %s19, 1
        %s205 = smul.addr %s204, 4
        %s206 = smul.addr %s205, 8
        %s207 = scalar_lea.vmem %s3, %s206
        %v208 = vld [vmem:[%s1] sm:$0xff]
        %v209 = vld [vmem:[%s1 + $0x8] sm:$0xff]
        %v210 = vld [vmem:[%s2] sm:$0xff]
        %v211 = vld [vmem:[%s2 + $0x8] sm:$0xff]
        %v212 = vlaneseq
        %v213 = vshrl.u32 %v212, 7
        %v214 = vadd.s32 %v213, 8
        %v215 = vld [vmem:[%s202] sm:$0xff]
        %v216 = vld [vmem:[%s202 + $0x8] sm:$0xff]
        %v217 = vld [vmem:[%s202 + $0x10] sm:$0xff]
        %v218 = vld [vmem:[%s202 + $0x18] sm:$0xff]
        %220 = vset.pattern.permute.xlu0 0
        %221 = vperm.xlu0 %220, %v210
        %v222 = vpop.permute.xlu0 %221
        %225 = vset.pattern.permute.xlu0 0
        %226 = vperm.xlu0 %225, %v211
        %v227 = vpop.permute.xlu0 %226
        %vm229 = vcmask 261120
        %v231 = vsel %vm229, %v208, 0
        %v234 = vsel %vm229, %v209, 0
        %236 = vmatprep.subr.mxu0 0.0
        %237 = vmatpush1.msra.mxu0 %v215
        %238 = vmatprep.subr.mxu0 0.0
        %239 = vmatpush1.msra.mxu0 %v216
        %240 = vmatprep.subr.mxu0 0.0
        %241 = vmatpush1.msra.mxu0 %v217
        %242 = vmatprep.subr.mxu0 0.0
        %243 = vmatpush1.msra.mxu0 %v218
        %244 = vmatprep.subr.mxu0 0.0
        %245 = vmatpush1.msra.mxu0 0.0
        %246 = vmatprep.subr.mxu0 0.0
        %247 = vmatpush1.msra.mxu0 0.0
        %248 = vmatprep.subr.mxu0 0.0
        %249 = vmatpush1.msra.mxu0 0.0
        %250 = vmatprep.subr.mxu0 0.0
        %251 = vmatpush1.msra.mxu0 0.0
        %252 = vmatprep.subr.mxu0 0.0
        %253 = vmatpush1.msra.mxu0 0.0
        %254 = vmatprep.subr.mxu0 0.0
        %255 = vmatpush1.msra.mxu0 0.0
        %256 = vmatprep.subr.mxu0 0.0
        %257 = vmatpush1.msra.mxu0 0.0
        %258 = vmatprep.subr.mxu0 0.0
        %259 = vmatpush1.msra.mxu0 0.0
        %260 = vmatprep.subr.mxu0 0.0
        %261 = vmatpush1.msra.mxu0 0.0
        %262 = vmatprep.subr.mxu0 0.0
        %263 = vmatpush1.msra.mxu0 0.0
        %264 = vmatprep.subr.mxu0 0.0
        %265 = vmatpush1.msra.mxu0 0.0
        %266 = vmatprep.subr.mxu0 0.0
        %267 = vmatpush1.msra.mxu0 0.0
        %268 = vmatprep.subr.mxu0 0.0
        %269 = vmatpush1.msra.mxu0 0.0
        %270 = vmatprep.subr.mxu0 0.0
        %271 = vmatpush1.msra.mxu0 0.0
        %272 = vmatprep.subr.mxu0 0.0
        %273 = vmatpush1.msra.mxu0 0.0
        %274 = vmatprep.subr.mxu0 0.0
        %275 = vmatpush1.msra.mxu0 0.0
        %276 = vmatprep.subr.mxu0 0.0
        %277 = vmatpush1.msra.mxu0 0.0
        %278 = vmatprep.subr.mxu0 0.0
        %279 = vmatpush1.msra.mxu0 0.0
        %280 = vmatprep.subr.mxu0 0.0
        %281 = vmatpush1.msra.mxu0 0.0
        %282 = vmatprep.subr.mxu0 0.0
        %283 = vmatpush1.msra.mxu0 0.0
        %284 = vmatprep.subr.mxu0 0.0
        %285 = vmatpush1.msra.mxu0 0.0
        %286 = vmatprep.subr.mxu0 0.0
        %287 = vmatpush1.msra.mxu0 0.0
        %288 = vmatprep.subr.mxu0 0.0
        %289 = vmatpush1.msra.mxu0 0.0
        %290 = vmatprep.subr.mxu0 0.0
        %291 = vmatpush1.msra.mxu0 0.0
        %292 = vmatprep.subr.mxu0 0.0
        %293 = vmatpush1.msra.mxu0 0.0
        %294 = vmatprep.subr.mxu0 0.0
        %295 = vmatpush1.msra.mxu0 0.0
        %296 = vmatprep.subr.mxu0 0.0
        %297 = vmatpush1.msra.mxu0 0.0
        %298 = vmatprep.subr.mxu0 0.0
        %299 = vmatpush1.msra.mxu0 0.0
        %300 = vmatprep.mubr.f32.mxu0 0.0
        %301 = vmatmul.mubr.f32.gmra.mrb[0].mxu0 %v231
        %v302 = vpop.f32.mrb[0].mxu0
        %v303 = vadd.f32 %v222, %v302
        %v304 = vpop.f32.mrb[0].mxu0
        %305 = vmatprep.mubr.f32.mxu0 0.0
        %306 = vmatmul.mubr.f32.gmra.mrb[0].mxu0 %v234
        %v307 = vpop.f32.mrb[0].mxu0
        %v308 = vadd.f32 %v227, %v307
        %v309 = vpop.f32.mrb[0].mxu0
        %310 = vdwg.mxu0
        %vm311 = vcmask 130048
        %v312 = vsel %vm311, %v303, -inf
        %v313 = vsel %vm311, %v308, -inf
        %v314 = vmax.f32 %v312, %v313
        %v315 = vrot.slane %v314, 4
        %v316 = vmax.f32 %v314, %v315
        %v317 = vrot.slane %v316, 2
        %v318 = vmax.f32 %v316, %v317
        %v319 = vrot.slane %v318, 1
        %v320 = vmax.f32 %v318, %v319
        %v321 = vsub.f32 %v303, %v320
        %v322 = vsub.f32 %v308, %v320
        %v323 = vmul.f32 %v321, 1.442695
        %v324 = vpow.pop %v323
        %v325 = vmul.f32 %v322, 1.442695
        %v326 = vpow.pop %v325
        %v327 = vsel %vm311, %v324, 0.0
        %v328 = vsel %vm311, %v326, 0.0
        %v329 = vadd.f32 %v327, %v328
        %v330 = vrot.slane %v329, 4
        %v331 = vadd.f32 %v329, %v330
        %v332 = vrot.slane %v331, 2
        %v333 = vadd.f32 %v331, %v332
        %v334 = vrot.slane %v333, 1
        %v335 = vadd.f32 %v333, %v334
        %v336 = vrcp.pop %v335
        %v337 = vmul.f32 1.0, %v336
        %v338 = vmul.f32 %v337, %v337
        %v339 = vsel %vm311, %v338, 0.0
        %340 = vadd.xlane.f32.xlu0 %v339
        %v341 = vpop.xlane.xlu0 %340
        %v342 = vrsqrt.pop %v341
        %v343 = vmul.f32 %v341, %v342
        %vm344 = vcmp.eq.f32.partialorder %v341, inf
        %v345 = vsel %vm344, %v341, %v343
        %vm346 = vcmp.eq.f32.partialorder %v341, 0.0
        %v347 = vand.u32 %v341, 2147483648
        %v348 = vsel %vm346, %v347, %v345
        %v349 = vmax.f32 %v348, 1e-12
        %v350 = vrcp.pop %v349
        %v351 = vmul.f32 %v337, %v350
        %v352 = vadd.f32 %v351, 1.0
        %v353 = vmul.f32 %v215, %v352
        %v354 = vmul.f32 %v216, %v352
        %v355 = vmul.f32 %v217, %v352
        %v356 = vmul.f32 %v218, %v352
        %357 = vst.msk [vmem:[%s207] sm:$0xff] %vm311, %v353
        %358 = vst.msk [vmem:[%s207 + $0x8] sm:$0xff] %vm311, %v354
        %359 = vst.msk [vmem:[%s207 + $0x10] sm:$0xff] %vm311, %v355
        %360 = vst.msk [vmem:[%s207 + $0x18] sm:$0xff] %vm311, %v356
        %vm361 = vcmp.eq.f32.partialorder %v303, %v320
        %vm362 = vcmp.eq.f32.partialorder %v308, %v320
        %v363 = vsel %vm361, %v213, 16
        %v364 = vsel %vm362, %v214, 16
        %v365 = vsel %vm311, %v363, 2147483647
        %v366 = vsel %vm311, %v364, 2147483647
        %vm367 = vcmp.lt.s32.totalorder %v365, %v366
        %v368 = vsel %vm367, %v365, %v366
        %v369 = vrot.slane %v368, 4
        %vm370 = vcmp.lt.s32.totalorder %v368, %v369
        %v371 = vsel %vm370, %v368, %v369
        %v372 = vrot.slane %v371, 2
        %vm373 = vcmp.lt.s32.totalorder %v371, %v372
        %v374 = vsel %vm373, %v371, %v372
        %v375 = vrot.slane %v374, 1
        %vm376 = vcmp.lt.s32.totalorder %v374, %v375
        %v377 = vsel %vm376, %v374, %v375
        %vm378 = vcmp.eq.s32.totalorder %v213, %v377
        %vm379 = vcmp.eq.s32.totalorder %v214, %v377
        %v380 = vsel %vm378, 1, 0
        %v381 = vsel %vm379, 1, 0
        %v382 = vcvt.s32.f32 %v380
        %v383 = vcvt.s32.f32 %v381
        %v385 = vsel %vm311, %v351, 0
        %v388 = vsel %vm311, %v382, 0
        %v391 = vsel %vm311, %v383, 0
        %393 = vmatprep.subr.mxu0 0.0
        %394 = vmatpush1.xpose.msra.mxu0 %v388
        %395 = vmatprep.subr.mxu0 0.0
        %396 = vmatpush1.xpose.msra.mxu0 %v391
        %397 = vmatprep.subr.mxu0 0.0
        %398 = vmatpush1.xpose.msra.mxu0 0.0
        %399 = vmatprep.subr.mxu0 0.0
        %400 = vmatpush1.xpose.msra.mxu0 0.0
        %401 = vmatprep.subr.mxu0 0.0
        %402 = vmatpush1.xpose.msra.mxu0 0.0
        %403 = vmatprep.subr.mxu0 0.0
        %404 = vmatpush1.xpose.msra.mxu0 0.0
        %405 = vmatprep.subr.mxu0 0.0
        %406 = vmatpush1.xpose.msra.mxu0 0.0
        %407 = vmatprep.subr.mxu0 0.0
        %408 = vmatpush1.xpose.msra.mxu0 0.0
        %409 = vmatprep.subr.mxu0 0.0
        %410 = vmatpush1.xpose.msra.mxu0 0.0
        %411 = vmatprep.subr.mxu0 0.0
        %412 = vmatpush1.xpose.msra.mxu0 0.0
        %413 = vmatprep.subr.mxu0 0.0
        %414 = vmatpush1.xpose.msra.mxu0 0.0
        %415 = vmatprep.subr.mxu0 0.0
        %416 = vmatpush1.xpose.msra.mxu0 0.0
        %417 = vmatprep.subr.mxu0 0.0
        %418 = vmatpush1.xpose.msra.mxu0 0.0
        %419 = vmatprep.subr.mxu0 0.0
        %420 = vmatpush1.xpose.msra.mxu0 0.0
        %421 = vmatprep.subr.mxu0 0.0
        %422 = vmatpush1.xpose.msra.mxu0 0.0
        %423 = vmatprep.subr.mxu0 0.0
        %424 = vmatpush1.xpose.msra.mxu0 0.0
        %425 = vmatprep.subr.mxu0 0.0
        %426 = vmatpush1.xpose.msra.mxu0 0.0
        %427 = vmatprep.subr.mxu0 0.0
        %428 = vmatpush1.xpose.msra.mxu0 0.0
        %429 = vmatprep.subr.mxu0 0.0
        %430 = vmatpush1.xpose.msra.mxu0 0.0
        %431 = vmatprep.subr.mxu0 0.0
        %432 = vmatpush1.xpose.msra.mxu0 0.0
        %433 = vmatprep.subr.mxu0 0.0
        %434 = vmatpush1.xpose.msra.mxu0 0.0
        %435 = vmatprep.subr.mxu0 0.0
        %436 = vmatpush1.xpose.msra.mxu0 0.0
        %437 = vmatprep.subr.mxu0 0.0
        %438 = vmatpush1.xpose.msra.mxu0 0.0
        %439 = vmatprep.subr.mxu0 0.0
        %440 = vmatpush1.xpose.msra.mxu0 0.0
        %441 = vmatprep.subr.mxu0 0.0
        %442 = vmatpush1.xpose.msra.mxu0 0.0
        %443 = vmatprep.subr.mxu0 0.0
        %444 = vmatpush1.xpose.msra.mxu0 0.0
        %445 = vmatprep.subr.mxu0 0.0
        %446 = vmatpush1.xpose.msra.mxu0 0.0
        %447 = vmatprep.subr.mxu0 0.0
        %448 = vmatpush1.xpose.msra.mxu0 0.0
        %449 = vmatprep.subr.mxu0 0.0
        %450 = vmatpush1.xpose.msra.mxu0 0.0
        %451 = vmatprep.subr.mxu0 0.0
        %452 = vmatpush1.xpose.msra.mxu0 0.0
        %453 = vmatprep.subr.mxu0 0.0
        %454 = vmatpush1.xpose.msra.mxu0 0.0
        %455 = vmatprep.subr.mxu0 0.0
        %456 = vmatpush1.xpose.msra.mxu0 0.0
        %457 = vmatprep.mubr.f32.mxu0 0.0
        %458 = vmatmul.mubr.f32.gmra.mrb[0].mxu0 %v385
        %v459 = vpop.f32.mrb[0].mxu0
        %v460 = vadd.f32 0.0, %v459
        %v461 = vpop.f32.mrb[0].mxu0
        %462 = vdwg.mxu0
        %v463 = vand.u32 2147483647, %v460
        %vm464 = vcmask 122880
        %v465 = vsel %vm464, %v463, 0.0
        %466 = vadd.xlane.f32.xlu0 %v465
        %v467 = vpop.xlane.xlu0 %466
        %v468 = vmax.f32 %v467, 1e-12
        %v469 = vrcp.pop %v468
        %v470 = vmul.f32 %v460, %v469
        %471 = vst.msk [vmem:[%s197] sm:$0x1] %vm464, %v470
        %p472 = scmp.lt.s32.totalorder %s19, 1
        %s473 = scalar_select %p472, %s19, 1
        %s474 = smul.addr %s473, 4
        %s475 = smul.addr %s474, 8
        %s476 = scalar_lea.vmem %s3, %s475
        %s477 = sand.u32 %s121, 1
        %s478 = scalar_lea.sflag [#allocation3], %s477
        %s479 = sand.u32 %s121, 1
        %s480 = scalar_lea.vmem [#allocation2], %s479
        // Predicated region
        $region33: #{cpm_forward.1} parent=31 // pred_check
          %p481 = pneg %p105
        $region34: #{cpm_forward.1} parent=31 // pred_check_branch
          %483 = sbr.rel (%p481) target = $region36
        $region35: #{cpm_forward.1} parent=31 // pred_region
          _
        $region36: #{cpm_forward.1} parent=31 // pred_fallthru
          _
        // Predicated region
        $region37: #{cpm_forward.1} parent=31 // pred_check
          %p484 = pneg %p131
        $region38: #{cpm_forward.1} parent=31 // pred_check_branch
          %486 = sbr.rel (%p484) target = $region40
        $region39: #{cpm_forward.1} parent=31 // pred_region
          %s488 = ssub.s32 16, 16
          %489 = vsyncadd %s478, %s488
          %s490 = smul.addr %s19, 16
          %s491 = scalar_lea.hbm %s4, %s490
          %s493 = sshll.u32 %s480, 4
          %s494 = int_to_ptr.vmem [resolvable:$true] %s493
          %496 = dma.vmem_to_hbm [thread:$0]  %s494, 16, %s491, %s478
        $region40: #{cpm_forward.1} parent=31 // pred_fallthru
          _
      $region32: #{cpm_forward.1} parent=5 // pred_fallthru
        _
      %p497 = scmp.le.s32.totalorder 2, %s14
      // Predicated region
      $region41: #{cpm_forward.1} parent=5 // pred_check
        %p498 = pneg %p497
      $region42: #{cpm_forward.1} parent=5 // pred_check_branch
        %500 = sbr.rel (%p498) target = $region44
      $region43: #{cpm_forward.1} parent=5 // pred_region
        %s501 = ssub.s32 %s14, 2
        // Predicated region
        $region45: #{cpm_forward.1} parent=43 // pred_check
          %p502 = pneg %p111
        $region46: #{cpm_forward.1} parent=43 // pred_check_branch
          %504 = sbr.rel (%p502) target = $region48
        $region47: #{cpm_forward.1} parent=43 // pred_region
          %p505 = scmp.lt.s32.totalorder %s20, 1
          %s506 = scalar_select %p505, %s20, 1
          %s507 = smul.addr %s506, 4
          %s508 = smul.addr %s507, 8
          %s509 = scalar_lea.vmem %s3, %s508
        $region48: #{cpm_forward.1} parent=43 // pred_fallthru
          _
        // Predicated region
        $region49: #{cpm_forward.1} parent=43 // pred_check
          %p510 = pneg %p137
        $region50: #{cpm_forward.1} parent=43 // pred_check_branch
          %512 = sbr.rel (%p510) target = $region52
        $region51: #{cpm_forward.1} parent=43 // pred_region
          %s513 = sand.u32 %s122, 1
          %s514 = scalar_lea.sflag [#allocation3], %s513
          %s515 = sand.u32 %s122, 1
          %s516 = scalar_lea.vmem [#allocation2], %s515
          %517 = dma.done %s514, 16
        $region52: #{cpm_forward.1} parent=43 // pred_fallthru
          _
      $region44: #{cpm_forward.1} parent=5 // pred_fallthru
        _
    $region6: #{cpm_forward.1} parent=1 // loop_footer
      %s18 = sadd.s32 1, %s14
    $region7: #{cpm_forward.1} parent=1 // loop_footer_branch
      %13 = sbr.rel target = $region3
    $region8: #{cpm_forward.1} parent=1 // loop_exit
      _
    %518 = vsyncpa [#allocation3], 1
    %s519 = scalar_lea.sflag [#allocation3], 1
    %520 = vsyncpa %s519, 1

</llo_original>
